<compile_context>
chip_gen: v5e
topology: v5e:2x2
jax: 0.10.0
libtpu: 0.0.40
codegen_flags: <defaults>
</compile_context>

<pallas_src>
import jax
import jax.numpy as jnp
from jax.experimental import pallas as pl
from jax.experimental.pallas import tpu as pltpu


def _bilstm_step_kernel(tok_ref, emb_ref, state_ref, w_ref, b_ref,
                        out_ref, lhs_ref):
    """Fused single-step bidirectional LSTM cell (seq_len == 1, batch == 1).

    Refs:
      tok_ref   : SMEM (1,)       int32  token id (scalar prefetch)
      emb_ref   : VMEM (V, H)     f32    embedding table (row gathered in-kernel)
      state_ref : VMEM (1, 4H)    f32    packed state [h_fwd | h_bwd | c_fwd | c_bwd]
      w_ref     : VMEM (4H, 8H)   f32    fused, K-padded, column-permuted weights
      b_ref     : VMEM (1, 8H)    f32    fused bias, same column permutation
      out_ref   : VMEM (2, 4H)    f32    row0 = [h_f|h_b|c_f|c_b], row1 = [out|0-pad]
      lhs_ref   : VMEM (1, 4H)    f32    scratch for the lane-dense MXU LHS
    """
    H = emb_ref.shape[1]

    # ---- In-kernel embedding gather (table resident in VMEM).
    # TODO(synk): for a large vocabulary (esp. v7x's 64 MiB VMEM), switch to a
    # scalar-prefetch-driven pl.Element(1) single-row BlockSpec (+ bf16 table) so
    # only O(H) bytes are DMA'd per step instead of the whole table.
    tok = tok_ref[0]
    x = emb_ref[pl.ds(tok, 1), :]                                   # (1, H)

    # ---- Lane-dense (1, 4H) LHS: [x | h_fwd | h_bwd | 0-pad], static slice writes.
    lhs_ref[:, 3 * H:4 * H] = jnp.zeros((1, H), lhs_ref.dtype)      # zero the K pad
    lhs_ref[:, 0:H] = x
    lhs_ref[:, H:3 * H] = state_ref[:, 0:2 * H]                     # [h_fwd | h_bwd]
    lhs = lhs_ref[...]                                              # one unmasked load

    # ---- Single MXU matmul for both directions and all four gate projections.
    #   w rows [0:H]   -> x contribution, rows [H:2H] -> h_fwd, rows [2H:3H] -> h_bwd,
    #   rows [3H:4H]   -> zero pad. Columns permuted: [i_f|i_r|f_f|f_r|o_f|o_r|g_f|g_r].
    gates = jnp.dot(lhs, w_ref[...],
                    preferred_element_type=jnp.float32) + b_ref[...]  # (1, 8H)

    # ---- Transcendentals only on the lanes that need them (EUP work halved).
    sg = jax.nn.sigmoid(gates[:, 0:6 * H])          # [i_f|i_r|f_f|f_r|o_f|o_r]
    g_pair = jnp.tanh(gates[:, 6 * H:8 * H])        # [g_f|g_r]

    i_pair = sg[:, 0:2 * H]
    f_pair = sg[:, 2 * H:4 * H]
    o_pair = sg[:, 4 * H:6 * H]
    c0_pair = state_ref[:, 2 * H:4 * H]             # [c_fwd | c_bwd]

    # ---- Both directions vectorized on (1, 2H) vectors; one tanh(c) call.
    c_new = f_pair * c0_pair + i_pair * g_pair      # (1, 2H) = [c_f' | c_b']
    h_new = o_pair * jnp.tanh(c_new)                # (1, 2H) = [h_f' | h_b']
    avg = (h_new[:, 0:H] + h_new[:, H:2 * H]) * 0.5  # (1, H)  fwd/bwd average

    # ---- One lane-dense (2, 4H) packed output block (single writeback DMA).
    out_ref[0:1, 0:2 * H] = h_new
    out_ref[0:1, 2 * H:4 * H] = c_new
    out_ref[1:2, 0:H] = avg
    out_ref[1:2, H:4 * H] = jnp.zeros((1, 3 * H), out_ref.dtype)


def prepare_encoder_params(raw):
    """One-time parameter preprocessing (do NOT run per decode step).

    Builds the K-padded (4H, 8H) block weight and (1, 8H) bias with the gate/column
    permutation [i_f | i_r | f_f | f_r | o_f | o_r | g_f | g_r].
    Weights kept in f32 (tiny; tighter parity with the torch reference).
    """
    H = raw["embedding"].shape[1]
    f32 = jnp.float32

    def gcol(w, g):  # (H, H) column block so that x @ gcol == gate-g pre-activation
        return w[g * H:(g + 1) * H, :].T.astype(f32)

    Z = jnp.zeros((H, H), f32)
    # torch.nn.LSTM gate row order is [i, f, g, o] -> indices i=0, f=1, g=2, o=3.
    order = [(0, "f"), (0, "r"), (1, "f"), (1, "r"),
             (3, "f"), (3, "r"), (2, "f"), (2, "r")]

    top = jnp.concatenate([gcol(raw[f"w_ih_{s}"], g) for g, s in order], axis=1)
    mid = jnp.concatenate([gcol(raw["w_hh_f"], g) if s == "f" else Z
                           for g, s in order], axis=1)
    bot = jnp.concatenate([gcol(raw["w_hh_r"], g) if s == "r" else Z
                           for g, s in order], axis=1)
    pad = jnp.zeros((H, 8 * H), f32)                               # K pad 3H -> 4H
    w_fused = jnp.concatenate([top, mid, bot, pad], axis=0)        # (4H, 8H)

    b_fused = jnp.concatenate(
        [raw[f"b_ih_{s}"][g * H:(g + 1) * H] + raw[f"b_hh_{s}"][g * H:(g + 1) * H]
         for g, s in order]).reshape(1, 8 * H).astype(f32)

    return {
        "embedding": raw["embedding"].astype(f32),
        "w_fused": jax.device_put(w_fused),
        "b_fused": jax.device_put(b_fused),
    }


@jax.jit
def encoder_bilstm_forward(token_id, hidden, prep):
    """Mirrors EncoderBiLSTM.forward.

    token_id : scalar int token index
    hidden   : (h0, c0), each (2, 1, H) float32
    prep     : output of prepare_encoder_params (cached, reused every step)

    Returns (output, (h_n, c_n)) with output (1, 1, H), h_n/c_n (2, 1, H).
    """
    emb = prep["embedding"]
    V, H = emb.shape
    h0, c0 = hidden

    # Packed lane-dense (1, 4H) state: [h_fwd | h_bwd | c_fwd | c_bwd].
    state = jnp.concatenate(
        [h0.reshape(1, 2 * H), c0.reshape(1, 2 * H)], axis=1).astype(jnp.float32)
    # Clamp token id: Pallas has no runtime OOB check on VMEM refs.
    tok = jnp.clip(jnp.asarray(token_id, dtype=jnp.int32), 0, V - 1).reshape((1,))

    grid_spec = pltpu.PrefetchScalarGridSpec(
        num_scalar_prefetch=1,
        grid=(1,),
        in_specs=[
            pl.BlockSpec((V, H), lambda i, tok: (0, 0)),              # embedding table
            pl.BlockSpec((1, 4 * H), lambda i, tok: (0, 0)),          # packed state
            pl.BlockSpec((4 * H, 8 * H), lambda i, tok: (0, 0)),      # fused weights
            pl.BlockSpec((1, 8 * H), lambda i, tok: (0, 0)),          # fused bias
        ],
        out_specs=pl.BlockSpec((2, 4 * H), lambda i, tok: (0, 0)),    # packed output
        scratch_shapes=[pltpu.VMEM((1, 4 * H), jnp.float32)],         # LHS scratch
    )

    packed = pl.pallas_call(
        _bilstm_step_kernel,
        out_shape=jax.ShapeDtypeStruct((2, 4 * H), jnp.float32),
        grid_spec=grid_spec,
        compiler_params=pltpu.CompilerParams(
            dimension_semantics=("arbitrary",)),
    )(tok, emb, state, prep["w_fused"], prep["b_fused"])

    # TODO(synk): if this encoder is driven over a whole sequence / many decode steps,
    # move the time loop inside the kernel (grid axis over t or lax.fori_loop with the
    # packed state carried in VMEM scratch) so the fused weights, bias and embedding
    # table stay VMEM-resident and the per-call dispatch + weight DMA is amortized;
    # for batched decode on v7x, add a leading "parallel" batch grid axis so both
    # TensorCores are used. The module's forward as specified is a single step.

    # Unpack (cheap XLA slices) and restore PyTorch shapes.
    h_n = packed[0, 0:2 * H].reshape(2, 1, H)
    c_n = packed[0, 2 * H:4 * H].reshape(2, 1, H)
    output = packed[1, 0:H].reshape(1, 1, H)
    return output, (h_n, c_n)


def _reference_forward(token_id, hidden, params):
    """Pure-JAX f32 reference matching torch.nn.LSTM cell math (seq_len == 1)."""
    H = params["embedding"].shape[1]
    x = params["embedding"][token_id].reshape(1, H)
    h0, c0 = hidden
    hs, cs = [], []
    for d, suf in enumerate(("f", "r")):
        gates = (x @ params[f"w_ih_{suf}"].T + params[f"b_ih_{suf}"]
                 + h0[d] @ params[f"w_hh_{suf}"].T + params[f"b_hh_{suf}"])
        i = jax.nn.sigmoid(gates[:, 0 * H:1 * H])
        f = jax.nn.sigmoid(gates[:, 1 * H:2 * H])
        g = jnp.tanh(gates[:, 2 * H:3 * H])
        o = jax.nn.sigmoid(gates[:, 3 * H:4 * H])
        c = f * c0[d] + i * g
        h = o * jnp.tanh(c)
        hs.append(h)
        cs.append(c)
    out = (hs[0] + hs[1]) / 2.0
    return out.reshape(1, 1, H), (jnp.stack(hs).reshape(2, 1, H),
                                  jnp.stack(cs).reshape(2, 1, H))


if __name__ == "__main__":
    VOCAB = 16     # input_size (embedding vocabulary)
    H = 32         # hidden_size

    key = jax.random.PRNGKey(0)
    ks = jax.random.split(key, 10)
    scale = 0.1
    params = {
        "embedding": scale * jax.random.normal(ks[0], (VOCAB, H), jnp.float32),
        # forward direction
        "w_ih_f": scale * jax.random.normal(ks[1], (4 * H, H), jnp.float32),
        "w_hh_f": scale * jax.random.normal(ks[2], (4 * H, H), jnp.float32),
        "b_ih_f": scale * jax.random.normal(ks[3], (4 * H,), jnp.float32),
        "b_hh_f": scale * jax.random.normal(ks[4], (4 * H,), jnp.float32),
        # reverse direction
        "w_ih_r": scale * jax.random.normal(ks[5], (4 * H, H), jnp.float32),
        "w_hh_r": scale * jax.random.normal(ks[6], (4 * H, H), jnp.float32),
        "b_ih_r": scale * jax.random.normal(ks[7], (4 * H,), jnp.float32),
        "b_hh_r": scale * jax.random.normal(ks[8], (4 * H,), jnp.float32),
    }

    # One-time weight prep (cached across decode steps).
    prep = prepare_encoder_params(params)

    token_id = jnp.int32(5)
    # initHidden(): zeros — but use small random h0 to exercise the h path.
    h0 = 0.05 * jax.random.normal(ks[9], (2, 1, H), jnp.float32)
    c0 = jnp.zeros((2, 1, H), jnp.float32)
    hidden = (h0, c0)

    output, (h_n, c_n) = encoder_bilstm_forward(token_id, hidden, prep)
    jax.block_until_ready((output, h_n, c_n))

    ref_out, (ref_h, ref_c) = _reference_forward(token_id, hidden, params)
    assert output.shape == (1, 1, H) and h_n.shape == (2, 1, H) and c_n.shape == (2, 1, H)
    # All-f32 storage now; tolerance kept loose only for MXU default f32 precision.
    assert jnp.allclose(output, ref_out, atol=1e-2), "output mismatch"
    assert jnp.allclose(h_n, ref_h, atol=1e-2), "h_n mismatch"
    assert jnp.allclose(c_n, ref_c, atol=1e-2), "c_n mismatch"

    print("KERNEL_OK")
</pallas_src>

<mosaic_0001>
module attributes {stable_mosaic.version = 11 : i64} {
  func.func @_bilstm_step_kernel(%arg0: i32, %arg1: memref<1xi32, #tpu.memory_space<smem>>, %arg2: memref<16x32xf32, #tpu.memory_space<vmem>>, %arg3: memref<1x128xf32, #tpu.memory_space<vmem>>, %arg4: memref<128x256xf32, #tpu.memory_space<vmem>>, %arg5: memref<1x256xf32, #tpu.memory_space<vmem>>, %arg6: memref<2x128xf32, #tpu.memory_space<vmem>>, %arg7: memref<1x128xf32, #tpu.memory_space<vmem>>) attributes {dimension_semantics = [#tpu.dimension_semantics<arbitrary>], iteration_bounds = array<i64: 1>, scalar_prefetch = 1 : i64, scratch_operands = 1 : i64, tpu.core_type = #tpu.core_type<tc>, window_params = [{pipeline_mode = #tpu.pipeline_mode<synchronous>, transform_indices = @transform_0, window_bounds = array<i64: 16, 32>}, {pipeline_mode = #tpu.pipeline_mode<synchronous>, transform_indices = @transform_1, window_bounds = array<i64: 1, 128>}, {pipeline_mode = #tpu.pipeline_mode<synchronous>, transform_indices = @transform_2, window_bounds = array<i64: 128, 256>}, {pipeline_mode = #tpu.pipeline_mode<synchronous>, transform_indices = @transform_3, window_bounds = array<i64: 1, 256>}, {pipeline_mode = #tpu.pipeline_mode<synchronous>, transform_indices = @transform_4, window_bounds = array<i64: 2, 128>}]} {
    %c0 = arith.constant 0 : index
    %0 = memref.load %arg1[%c0] : memref<1xi32, #tpu.memory_space<smem>>
    %1 = arith.index_cast %0 : i32 to index
    %c0_0 = arith.constant 0 : index
    %2 = vector.load %arg2[%1, %c0_0] : memref<16x32xf32, #tpu.memory_space<vmem>>, vector<1x32xf32>
    %cst = arith.constant 0.000000e+00 : f32
    %3 = vector.broadcast %cst : f32 to vector<1x32xf32>
    %c0_1 = arith.constant 0 : index
    %c96 = arith.constant 96 : index
    %4 = vector.load %arg7[%c0_1, %c96] : memref<1x128xf32, #tpu.memory_space<vmem>>, vector<1x32xf32>
    tpu.vector_store %arg7[%c0_1, %c96], %3 {strides = array<i32>} : memref<1x128xf32, #tpu.memory_space<vmem>>, vector<1x32xf32>,
    %c0_2 = arith.constant 0 : index
    %c0_3 = arith.constant 0 : index
    %5 = vector.load %arg7[%c0_2, %c0_3] : memref<1x128xf32, #tpu.memory_space<vmem>>, vector<1x32xf32>
    tpu.vector_store %arg7[%c0_2, %c0_3], %2 {strides = array<i32>} : memref<1x128xf32, #tpu.memory_space<vmem>>, vector<1x32xf32>,
    %c0_4 = arith.constant 0 : index
    %c0_5 = arith.constant 0 : index
    %6 = vector.load %arg3[%c0_4, %c0_5] : memref<1x128xf32, #tpu.memory_space<vmem>>, vector<1x64xf32>
    %c0_6 = arith.constant 0 : index
    %c32 = arith.constant 32 : index
    %7 = vector.load %arg7[%c0_6, %c32] : memref<1x128xf32, #tpu.memory_space<vmem>>, vector<1x64xf32>
    tpu.vector_store %arg7[%c0_6, %c32], %6 {strides = array<i32>} : memref<1x128xf32, #tpu.memory_space<vmem>>, vector<1x64xf32>,
    %c0_7 = arith.constant 0 : index
    %c0_8 = arith.constant 0 : index
    %8 = vector.load %arg7[%c0_7, %c0_8] : memref<1x128xf32, #tpu.memory_space<vmem>>, vector<1x128xf32>
    %c0_9 = arith.constant 0 : index
    %c0_10 = arith.constant 0 : index
    %9 = vector.load %arg4[%c0_9, %c0_10] : memref<128x256xf32, #tpu.memory_space<vmem>>, vector<128x256xf32>
    %cst_11 = arith.constant dense<0.000000e+00> : vector<1x256xf32>
    %10 = tpu.matmul %8, %9, %cst_11 {dimension_numbers = #tpu.dot_dimension_numbers<[1], [0], [0], [1], [0, 0, 1, 1], [], []>} : vector<1x128xf32>, vector<128x256xf32>, vector<1x256xf32> -> vector<1x256xf32>
    %c0_12 = arith.constant 0 : index
    %c0_13 = arith.constant 0 : index
    %11 = vector.load %arg5[%c0_12, %c0_13] : memref<1x256xf32, #tpu.memory_space<vmem>>, vector<1x256xf32>
    %12 = arith.addf %10, %11 : vector<1x256xf32>
    %13 = vector.extract_strided_slice %12 {offsets = [0, 0], sizes = [1, 192], strides = [1, 1]} : vector<1x256xf32> to vector<1x192xf32>
    %14 = arith.negf %13 : vector<1x192xf32>
    %15 = math.exp %14 : vector<1x192xf32>
    %cst_14 = arith.constant 1.000000e+00 : f32
    %16 = vector.broadcast %cst_14 : f32 to vector<1x192xf32>
    %17 = arith.addf %16, %15 : vector<1x192xf32>
    %18 = arith.divf %16, %17 : vector<1x192xf32>
    %19 = vector.extract_strided_slice %12 {offsets = [0, 192], sizes = [1, 64], strides = [1, 1]} : vector<1x256xf32> to vector<1x64xf32>
    %20 = math.tanh %19 : vector<1x64xf32>
    %21 = vector.extract_strided_slice %18 {offsets = [0, 0], sizes = [1, 64], strides = [1, 1]} : vector<1x192xf32> to vector<1x64xf32>
    %22 = vector.extract_strided_slice %18 {offsets = [0, 64], sizes = [1, 64], strides = [1, 1]} : vector<1x192xf32> to vector<1x64xf32>
    %23 = vector.extract_strided_slice %18 {offsets = [0, 128], sizes = [1, 64], strides = [1, 1]} : vector<1x192xf32> to vector<1x64xf32>
    %c0_15 = arith.constant 0 : index
    %c64 = arith.constant 64 : index
    %24 = vector.load %arg3[%c0_15, %c64] : memref<1x128xf32, #tpu.memory_space<vmem>>, vector<1x64xf32>
    %25 = arith.mulf %22, %24 : vector<1x64xf32>
    %26 = arith.mulf %21, %20 : vector<1x64xf32>
    %27 = arith.addf %25, %26 : vector<1x64xf32>
    %28 = math.tanh %27 : vector<1x64xf32>
    %29 = arith.mulf %23, %28 : vector<1x64xf32>
    %30 = vector.extract_strided_slice %29 {offsets = [0, 0], sizes = [1, 32], strides = [1, 1]} : vector<1x64xf32> to vector<1x32xf32>
    %31 = vector.extract_strided_slice %29 {offsets = [0, 32], sizes = [1, 32], strides = [1, 1]} : vector<1x64xf32> to vector<1x32xf32>
    %32 = arith.addf %30, %31 : vector<1x32xf32>
    %cst_16 = arith.constant 5.000000e-01 : f32
    %33 = vector.broadcast %cst_16 : f32 to vector<1x32xf32>
    %34 = arith.mulf %32, %33 : vector<1x32xf32>
    %c0_17 = arith.constant 0 : index
    %c0_18 = arith.constant 0 : index
    %35 = vector.load %arg6[%c0_17, %c0_18] : memref<2x128xf32, #tpu.memory_space<vmem>>, vector<1x64xf32>
    tpu.vector_store %arg6[%c0_17, %c0_18], %29 {strides = array<i32>} : memref<2x128xf32, #tpu.memory_space<vmem>>, vector<1x64xf32>,
    %c0_19 = arith.constant 0 : index
    %c64_20 = arith.constant 64 : index
    %36 = vector.load %arg6[%c0_19, %c64_20] : memref<2x128xf32, #tpu.memory_space<vmem>>, vector<1x64xf32>
    tpu.vector_store %arg6[%c0_19, %c64_20], %27 {strides = array<i32>} : memref<2x128xf32, #tpu.memory_space<vmem>>, vector<1x64xf32>,
    %c1 = arith.constant 1 : index
    %c0_21 = arith.constant 0 : index
    %37 = vector.load %arg6[%c1, %c0_21] : memref<2x128xf32, #tpu.memory_space<vmem>>, vector<1x32xf32>
    tpu.vector_store %arg6[%c1, %c0_21], %34 {strides = array<i32>} : memref<2x128xf32, #tpu.memory_space<vmem>>, vector<1x32xf32>,
    %cst_22 = arith.constant 0.000000e+00 : f32
    %38 = vector.broadcast %cst_22 : f32 to vector<1x96xf32>
    %c1_23 = arith.constant 1 : index
    %c32_24 = arith.constant 32 : index
    %39 = vector.load %arg6[%c1_23, %c32_24] : memref<2x128xf32, #tpu.memory_space<vmem>>, vector<1x96xf32>
    tpu.vector_store %arg6[%c1_23, %c32_24], %38 {strides = array<i32>} : memref<2x128xf32, #tpu.memory_space<vmem>>, vector<1x96xf32>,
    return
  }
  func.func @transform_0(%arg0: i32, %arg1: memref<1xi32, #tpu.memory_space<smem>>) -> (i32, i32) {
    %c0_i32 = arith.constant 0 : i32
    %c0_i32_0 = arith.constant 0 : i32
    %c0_i32_1 = arith.constant 0 : i32
    return %c0_i32, %c0_i32_0 : i32, i32
  }
  func.func @transform_1(%arg0: i32, %arg1: memref<1xi32, #tpu.memory_space<smem>>) -> (i32, i32) {
    %c0_i32 = arith.constant 0 : i32
    %c0_i32_0 = arith.constant 0 : i32
    %c0_i32_1 = arith.constant 0 : i32
    return %c0_i32, %c0_i32_0 : i32, i32
  }
  func.func @transform_2(%arg0: i32, %arg1: memref<1xi32, #tpu.memory_space<smem>>) -> (i32, i32) {
    %c0_i32 = arith.constant 0 : i32
    %c0_i32_0 = arith.constant 0 : i32
    %c0_i32_1 = arith.constant 0 : i32
    return %c0_i32, %c0_i32_0 : i32, i32
  }
  func.func @transform_3(%arg0: i32, %arg1: memref<1xi32, #tpu.memory_space<smem>>) -> (i32, i32) {
    %c0_i32 = arith.constant 0 : i32
    %c0_i32_0 = arith.constant 0 : i32
    %c0_i32_1 = arith.constant 0 : i32
    return %c0_i32, %c0_i32_0 : i32, i32
  }
  func.func @transform_4(%arg0: i32, %arg1: memref<1xi32, #tpu.memory_space<smem>>) -> (i32, i32) {
    %c0_i32 = arith.constant 0 : i32
    %c0_i32_0 = arith.constant 0 : i32
    %c0_i32_1 = arith.constant 0 : i32
    return %c0_i32, %c0_i32_0 : i32, i32
  }
}

</mosaic_0001>

<llo_original>
// kernel: squeeze.4
$region0: #{squeeze.4}
  %s0 = inlined_call_operand.vmem [shape: f32[64], index: 0, kind: input, shape index: {}]
  %s1 = inlined_call_operand.hbm [shape: f32[2,1,32], index: 1, kind: output, shape index: {}]
  $region1: #{squeeze.4} parent=0
    #allocation0 [shape = 'u8[1024]{0}', space=vmem, size = 0x400, scoped, tag = 'operand span for operand 1']
    #allocation1 [shape = 's32[1]{0}', space=sflag, size = 0x4, scoped, tag = 'scoped memory for squeeze.4']
    #allocation2 [shape = 'u8[4096]{0}', space=vmem, size = 0x1000, scoped, tag = 'scoped mem for output reshape']
    #allocation3 [shape = 'u8[4096]{0}', space=vmem, size = 0x1000, scoped, tag = 'scoped mem for input reshape']
    %2 = vsyncpa [#allocation1], 0
    %s4 = ssub.s32 2, 1
    %v5 = vld [vmem:[%s0] sm:%s4]
    %6 = vst [vmem:[#allocation3] sm:%s4] %v5
    %v7 = vld [vmem:[#allocation3] sm:$0x1]
    %vm8 = vcmask 261120
    %9 = vst.msk [vmem:[#allocation2] sm:$0x1] %vm8, %v7
    %v10 = vld [vmem:[#allocation3] sm:$0x1]
    %11 = vrot.lane.b32.xlu0 %v10, 96
    %v12 = vpop.permute.xlu0 %11
    %vm13 = vcmask 261120
    %s14 = scalar_lea.vmem [#allocation2], 1
    %15 = vst.msk [vmem:[%s14] sm:$0x1] %vm13, %v12
    %s17 = ssub.s32 4, 1
    %v18 = vld [vmem:[#allocation2] sm:%s17]
    %s20 = ssub.s32 4, 1
    %21 = vst [vmem:[#allocation0] sm:%s20] %v18
    %23 = vsyncadd [#allocation1], 0
    %s25 = sshll.u32 [#allocation0], 4
    %s26 = int_to_ptr.vmem [resolvable:$true] %s25
    %s27 = sshll.u32 %s1, 4
    %s28 = int_to_ptr.hbm [resolvable:$true] %s27
    %30 = dma.vmem_to_hbm [thread:$0]  %s26, 32, %s28, [#allocation1]
    %32 = dma.done [#allocation1], 32
    %33 = vsyncpa [#allocation1], 1

// kernel: encoder_bilstm_forward.1
$region0: #{encoder_bilstm_forward.1}
  #allocation0 [shape = 'u32[]', space=smem, size = 0x4, offset = 0x4, fixed_abs, tag = 'smem constant byte address 0x4 - core index']
  #allocation1 [shape = 'u32[72,128]{1,0:T(1,128)}', space=vmem, size = 0x9000, scoped, tag = 'internal scratch']
  #allocation2 [shape = 'f32[1,128]{1,0:T(1,128)}', space=vmem, size = 0x200, scoped, tag = 'scratch operand']
  #allocation3 [shape = 's32[1]{0}', space=sflag, size = 0x4, scoped, tag = 'scoped memory for encoder_bilstm_forward.1']
  #allocation4 [shape = 's32[1]{0:T(128)S(6)}', space=smem, size = 0x200, scoped, tag = 'prefetched SMEM operand 0']
  %s0 = inlined_call_operand.<no memory space> [shape: s32[1], index: 0, kind: input, shape index: {}]
  %s1 = inlined_call_operand.hbm [shape: f32[16,32], index: 1, kind: input, shape index: {}]
  %s2 = inlined_call_operand.vmem [shape: f32[1,128], index: 2, kind: input, shape index: {}]
  %s3 = inlined_call_operand.hbm [shape: f32[128,256], index: 3, kind: input, shape index: {}]
  %s4 = inlined_call_operand.vmem [shape: f32[1,256], index: 4, kind: input, shape index: {}]
  %s5 = inlined_call_operand.vmem [shape: f32[2,128], index: 5, kind: output, shape index: {}]
  %s6 = sld [smem:[#allocation0]]
  $region34: #{encoder_bilstm_forward.1} parent=0
    _
  %s8 = ssub.s32 1, %s6
  %s9 = scalar_select 0, %s8, %s6
  %10 = sst [smem:[#allocation4]] %s0
  $region1: #{encoder_bilstm_forward.1} parent=0
    #allocation5 [shape = 'u8[8192]{0}', space=vmem, size = 0x2000, scoped, tag = 'input window, operand 1, single buffered']
    #allocation6 [shape = 's32[1]{0}', space=sflag, size = 0x4, scoped, tag = 'scoped memory for encoder_bilstm_forward.1']
    #allocation7 [shape = 'u8[131072]{0}', space=vmem, size = 0x20000, scoped, tag = 'input window, operand 3, single buffered']
    #allocation8 [shape = 's32[1]{0}', space=sflag, size = 0x4, scoped, tag = 'scoped memory for encoder_bilstm_forward.1']
    %11 = vsyncpa [#allocation6], 0
    %12 = vsyncpa [#allocation8], 0
    // Predicated region
    $region2: #{encoder_bilstm_forward.1} parent=1 // pred_check
      _
    $region3: #{encoder_bilstm_forward.1} parent=1 // pred_check_branch
      %14 = sbr.rel (0) target = $region5
    $region4: #{encoder_bilstm_forward.1} parent=1 // pred_region
      %16 = vsyncadd [#allocation6], 0
      %s17 = sshll.u32 %s1, 4
      %s18 = int_to_ptr.hbm [resolvable:$true] %s17
      %s19 = sshll.u32 [#allocation5], 4
      %s20 = int_to_ptr.vmem [resolvable:$true] %s19
      %25 = dma.hbm_to_vmem [thread:$0]  %s18, 256, %s20, [#allocation6], 128, 128, 8
    $region5: #{encoder_bilstm_forward.1} parent=1 // pred_fallthru
      _
    // Predicated region
    $region6: #{encoder_bilstm_forward.1} parent=1 // pred_check
      _
    $region7: #{encoder_bilstm_forward.1} parent=1 // pred_check_branch
      %27 = sbr.rel (0) target = $region9
    $region8: #{encoder_bilstm_forward.1} parent=1 // pred_region
      _
    $region9: #{encoder_bilstm_forward.1} parent=1 // pred_fallthru
      _
    // Predicated region
    $region10: #{encoder_bilstm_forward.1} parent=1 // pred_check
      _
    $region11: #{encoder_bilstm_forward.1} parent=1 // pred_check_branch
      %29 = sbr.rel (0) target = $region13
    $region12: #{encoder_bilstm_forward.1} parent=1 // pred_region
      %31 = vsyncadd [#allocation8], 0
      %s32 = sshll.u32 %s3, 4
      %s33 = int_to_ptr.hbm [resolvable:$true] %s32
      %s34 = sshll.u32 [#allocation7], 4
      %s35 = int_to_ptr.vmem [resolvable:$true] %s34
      %40 = dma.hbm_to_vmem [thread:$0]  %s33, 4096, %s35, [#allocation8], 256, 256, 16
    $region13: #{encoder_bilstm_forward.1} parent=1 // pred_fallthru
      _
    // Predicated region
    $region14: #{encoder_bilstm_forward.1} parent=1 // pred_check
      _
    $region15: #{encoder_bilstm_forward.1} parent=1 // pred_check_branch
      %42 = sbr.rel (0) target = $region17
    $region16: #{encoder_bilstm_forward.1} parent=1 // pred_region
      _
    $region17: #{encoder_bilstm_forward.1} parent=1 // pred_fallthru
      _
    // Predicated region
    $region18: #{encoder_bilstm_forward.1} parent=1 // pred_check
      _
    $region19: #{encoder_bilstm_forward.1} parent=1 // pred_check_branch
      %44 = sbr.rel (0) target = $region21
    $region20: #{encoder_bilstm_forward.1} parent=1 // pred_region
      %46 = dma.done [#allocation6], 256
    $region21: #{encoder_bilstm_forward.1} parent=1 // pred_fallthru
      _
    // Predicated region
    $region22: #{encoder_bilstm_forward.1} parent=1 // pred_check
      _
    $region23: #{encoder_bilstm_forward.1} parent=1 // pred_check_branch
      %48 = sbr.rel (0) target = $region25
    $region24: #{encoder_bilstm_forward.1} parent=1 // pred_region
      %50 = dma.done [#allocation8], 4096
    $region25: #{encoder_bilstm_forward.1} parent=1 // pred_fallthru
      _
    %s51 = sld [smem:[#allocation4]]
    %s52 = scalar_lea.vmem [#allocation5], %s51
    %v53 = vld [vmem:[%s52] sm:$0x1]
    %vm54 = vcmask 1041152
    %55 = vst.msk [vmem:[#allocation2] sm:$0x1] %vm54, 0.0
    %vm56 = vcmask 253952
    %57 = vst.msk [vmem:[#allocation2] sm:$0x1] %vm56, %v53
    %v58 = vld [vmem:[%s2] sm:$0x1]
    %v60 = vperm.slane %v58, 0
    %61 = vrot.lane.b32.xlu0 %v60, 32
    %v62 = vpop.permute.xlu0 %61
    %vm64 = vcmask 778496
    %65 = vst.msk [vmem:[#allocation2] sm:$0x1] %vm64, %v62
    %v66 = vld [vmem:[#allocation2] sm:$0x1]
    %v67 = vld [vmem:[#allocation7] sm:$0xff]
    %v68 = vld [vmem:[#allocation7 + $0x8] sm:$0xff]
    %v69 = vld [vmem:[#allocation7 + $0x10] sm:$0xff]
    %v70 = vld [vmem:[#allocation7 + $0x18] sm:$0xff]
    %v71 = vld [vmem:[#allocation7 + $0x20] sm:$0xff]
    %v72 = vld [vmem:[#allocation7 + $0x28] sm:$0xff]
    %v73 = vld [vmem:[#allocation7 + $0x30] sm:$0xff]
    %v74 = vld [vmem:[#allocation7 + $0x38] sm:$0xff]
    %v75 = vld [vmem:[#allocation7 + $0x40] sm:$0xff]
    %v76 = vld [vmem:[#allocation7 + $0x48] sm:$0xff]
    %v77 = vld [vmem:[#allocation7 + $0x50] sm:$0xff]
    %v78 = vld [vmem:[#allocation7 + $0x58] sm:$0xff]
    %v79 = vld [vmem:[#allocation7 + $0x60] sm:$0xff]
    %v80 = vld [vmem:[#allocation7 + $0x68] sm:$0xff]
    %v81 = vld [vmem:[#allocation7 + $0x70] sm:$0xff]
    %v82 = vld [vmem:[#allocation7 + $0x78] sm:$0xff]
    %v83 = vld [vmem:[#allocation7 + $0x80] sm:$0xff]
    %v84 = vld [vmem:[#allocation7 + $0x88] sm:$0xff]
    %v85 = vld [vmem:[#allocation7 + $0x90] sm:$0xff]
    %v86 = vld [vmem:[#allocation7 + $0x98] sm:$0xff]
    %v87 = vld [vmem:[#allocation7 + $0xa0] sm:$0xff]
    %v88 = vld [vmem:[#allocation7 + $0xa8] sm:$0xff]
    %v89 = vld [vmem:[#allocation7 + $0xb0] sm:$0xff]
    %v90 = vld [vmem:[#allocation7 + $0xb8] sm:$0xff]
    %v91 = vld [vmem:[#allocation7 + $0xc0] sm:$0xff]
    %v92 = vld [vmem:[#allocation7 + $0xc8] sm:$0xff]
    %v93 = vld [vmem:[#allocation7 + $0xd0] sm:$0xff]
    %v94 = vld [vmem:[#allocation7 + $0xd8] sm:$0xff]
    %v95 = vld [vmem:[#allocation7 + $0xe0] sm:$0xff]
    %v96 = vld [vmem:[#allocation7 + $0xe8] sm:$0xff]
    %v97 = vld [vmem:[#allocation7 + $0xf0] sm:$0xff]
    %v98 = vld [vmem:[#allocation7 + $0xf8] sm:$0xff]
    %v99 = vld [vmem:[%s4] sm:$0x3]
    %v101 = vperm.slane %v99, 0
    %v102 = vperm.slane %v99, 1
    %105 = vmatpush.msra.mxu0 %v97
    %106 = vmatpush.msra.mxu0 %v95
    %107 = vmatpush.msra.mxu0 %v93
    %108 = vmatpush.msra.mxu0 %v91
    %109 = vmatpush.msra.mxu0 %v89
    %110 = vmatpush.msra.mxu0 %v87
    %111 = vmatpush.msra.mxu0 %v85
    %112 = vmatpush.msra.mxu0 %v83
    %113 = vmatpush.msra.mxu0 %v81
    %114 = vmatpush.msra.mxu0 %v79
    %115 = vmatpush.msra.mxu0 %v77
    %116 = vmatpush.msra.mxu0 %v75
    %117 = vmatpush.msra.mxu0 %v73
    %118 = vmatpush.msra.mxu0 %v71
    %119 = vmatpush.msra.mxu0 %v69
    %120 = vmatpush.msra.mxu0 %v67
    %121 = vmatmul.f32.gmra.mxu0 %v66
    %v122 = vpop.f32.mrf.mxu0
    %v123 = vadd.f32 %v101, %v122
    %124 = vdwg.mxu0
    %125 = vmatpush.msra.mxu0 %v98
    %126 = vmatpush.msra.mxu0 %v96
    %127 = vmatpush.msra.mxu0 %v94
    %128 = vmatpush.msra.mxu0 %v92
    %129 = vmatpush.msra.mxu0 %v90
    %130 = vmatpush.msra.mxu0 %v88
    %131 = vmatpush.msra.mxu0 %v86
    %132 = vmatpush.msra.mxu0 %v84
    %133 = vmatpush.msra.mxu0 %v82
    %134 = vmatpush.msra.mxu0 %v80
    %135 = vmatpush.msra.mxu0 %v78
    %136 = vmatpush.msra.mxu0 %v76
    %137 = vmatpush.msra.mxu0 %v74
    %138 = vmatpush.msra.mxu0 %v72
    %139 = vmatpush.msra.mxu0 %v70
    %140 = vmatpush.msra.mxu0 %v68
    %141 = vmatmul.f32.gmra.mxu0 %v66
    %v142 = vpop.f32.mrf.mxu0
    %v143 = vadd.f32 %v102, %v142
    %144 = vdwg.mxu0
    %v145 = vxor.u32 %v123, 2147483648
    %v146 = vxor.u32 %v143, 2147483648
    %v147 = vmul.f32 %v145, 1.442695
    %v148 = vpow.pop %v147
    %v149 = vmul.f32 %v146, 1.442695
    %v150 = vpow.pop %v149
    %v151 = vadd.f32 %v148, 1.0
    %v152 = vadd.f32 %v150, 1.0
    %v153 = vrcp.pop %v151
    %v154 = vmul.f32 %v151, %v153
    %v155 = vsub.f32 1.0, %v154
    %v156 = vmul.f32 %v153, %v155
    %v157 = vadd.f32 %v153, %v156
    %vm158 = vweird.f32 %v151
    %vm159 = vweird.f32 %v153
    %vm160 = vmor %vm158, %vm159
    %v161 = vsel %vm160, %v153, %v157
    %v162 = vand.u32 2147483647, %v151
    %vm163 = vcmp.eq.f32.partialorder %v162, 8.507059e+37
    %v164 = vand.u32 %v151, 2147483648
    %v165 = vor.u32 1.1754944e-38, %v164
    %v166 = vsel %vm163, %v165, %v161
    %v167 = vmul.f32 1.0, %v166
    %v168 = vrcp.pop %v152
    %v169 = vmul.f32 %v152, %v168
    %v170 = vsub.f32 1.0, %v169
    %v171 = vmul.f32 %v168, %v170
    %v172 = vadd.f32 %v168, %v171
    %vm173 = vweird.f32 %v152
    %vm174 = vweird.f32 %v168
    %vm175 = vmor %vm173, %vm174
    %v176 = vsel %vm175, %v168, %v172
    %v177 = vand.u32 2147483647, %v152
    %vm178 = vcmp.eq.f32.partialorder %v177, 8.507059e+37
    %v179 = vand.u32 %v152, 2147483648
    %v180 = vor.u32 1.1754944e-38, %v179
    %v181 = vsel %vm178, %v180, %v176
    %v182 = vmul.f32 1.0, %v181
    %v183 = vtanh.pop %v143
    %v184 = vld [vmem:[%s2] sm:$0x1]
    %v185 = vmul.f32 %v167, %v184
    %187 = vrot.lane.b32.xlu0 %v183, 64
    %v188 = vpop.permute.xlu0 %187
    %v190 = vmul.f32 %v167, %v188
    %192 = vrot.lane.b32.xlu0 %v190, 64
    %v193 = vpop.permute.xlu0 %192
    %v195 = vadd.f32 %v185, %v193
    %v196 = vtanh.pop %v195
    %198 = vrot.lane.b32.xlu0 %v196, 64
    %v199 = vpop.permute.xlu0 %198
    %v201 = vmul.f32 %v182, %v199
    %203 = vrot.lane.b32.xlu0 %v201, 96
    %v204 = vpop.permute.xlu0 %203
    %v206 = vadd.f32 %v201, %v204
    %v207 = vmul.f32 %v206, 0.5
    %vm208 = vcmask 516096
    %209 = vst.msk [vmem:[%s5] sm:$0x1] %vm208, %v201
    %vm210 = vcmask 1040896
    %211 = vst.msk [vmem:[%s5] sm:$0x1] %vm210, %v195
    %212 = vst.msk [vmem:[%s5 + $0x1] sm:$0x1] %vm56, %v207
    %vm213 = vcmask 1040640
    %214 = vst.msk [vmem:[%s5 + $0x1] sm:$0x1] %vm213, 0.0
    // Predicated region
    $region26: #{encoder_bilstm_forward.1} parent=1 // pred_check
      _
    $region27: #{encoder_bilstm_forward.1} parent=1 // pred_check_branch
      %216 = sbr.rel (0) target = $region29
    $region28: #{encoder_bilstm_forward.1} parent=1 // pred_region
      _
    $region29: #{encoder_bilstm_forward.1} parent=1 // pred_fallthru
      _
    // Predicated region
    $region30: #{encoder_bilstm_forward.1} parent=1 // pred_check
      _
    $region31: #{encoder_bilstm_forward.1} parent=1 // pred_check_branch
      %218 = sbr.rel (0) target = $region33
    $region32: #{encoder_bilstm_forward.1} parent=1 // pred_region
      _
    $region33: #{encoder_bilstm_forward.1} parent=1 // pred_fallthru
      _
    %219 = vsyncpa [#allocation6], 1
    %220 = vsyncpa [#allocation8], 1

</llo_original>
